<compile_context>
chip_gen: v6e
topology: v6e:2x2x1
jax: 0.10.0
libtpu: 0.0.40
codegen_flags: <defaults>
</compile_context>

<pallas_src>
import numpy as np
import jax
import jax.numpy as jnp
from jax.experimental import pallas as pl
from jax.experimental.pallas import tpu as pltpu

# The FC matmuls are tiny (NB x C x Cr); full f32 precision is free and keeps
# the kernel bit-comparable to the pure-JAX reference.
jax.config.update("jax_default_matmul_precision", "float32")


# ---------------------------------------------------------------------------
# Fused kernel: avg-pool -> fc1 -> relu -> fc2 -> sigmoid -> channel scale
# ---------------------------------------------------------------------------
def _channel_gate_kernel(x_ref, w1t_ref, b1_ref, w2t_ref, b2_ref, o_ref):
    # x  : (NB, C, HW)  lane-dense spatial axis, resident in VMEM
    # w1t: (C, Cr), b1: (1, Cr)     -- fc1 weight transposed to (in, out)
    # w2t: (Cr, C), b2: (1, C)      -- fc2 weight transposed to (in, out)
    # o  : (NB, C, HW)
    x = x_ref[...]
    hw = x.shape[-1]

    # Global average pool: cross-lane reduce (XLU) -> (NB, C)
    avg = jnp.sum(x, axis=-1) * (1.0 / hw)

    # fc1 -> ReLU -> fc2 -> sigmoid; batched tiny matmuls over the NB images.
    h = jnp.dot(avg, w1t_ref[...],
                preferred_element_type=jnp.float32,
                precision=jax.lax.Precision.HIGHEST) + b1_ref[...]
    h = jnp.maximum(h, 0.0)                                  # (NB, Cr)
    z = jnp.dot(h, w2t_ref[...],
                preferred_element_type=jnp.float32,
                precision=jax.lax.Precision.HIGHEST) + b2_ref[...]
    g = 1.0 / (1.0 + jnp.exp(-z))                            # (NB, C), EUP exp

    # Channel-wise gate: per-(image, channel) scalar broadcast along lanes.
    o_ref[...] = x * g[:, :, None]


def _pick_batch_tile(n, bytes_per_image, vmem_budget=8 * 1024 * 1024):
    """Largest divisor of n whose (double-buffered in+out) tile fits the budget."""
    per_image = 4 * bytes_per_image          # input + output, each double-buffered
    cap = max(1, vmem_budget // max(per_image, 1))
    for nb in range(min(n, cap), 0, -1):
        if n % nb == 0:
            return nb
    return 1


def channel_gate_2d(x_nchw, w1, b1, w2, b2):
    """ChannelGate2d forward.

    x_nchw : (N, C, H, W) float32
    w1     : (Cr, C)  fc1 weight (PyTorch Conv2d (out, in) orientation)
    b1     : (Cr,)    fc1 bias
    w2     : (C, Cr)  fc2 weight
    b2     : (C,)     fc2 bias
    Returns (N, C, H, W) float32.
    """
    N, C, H, W = x_nchw.shape
    HW = H * W
    Cr = w1.shape[0]

    # Free contiguous reshape: NCHW -> (N, C, H*W); spatial dim is lane-dense.
    x = x_nchw.reshape(N, C, HW)
    # Pre-transpose the tiny weights to (in, out) and biases to row vectors so
    # the kernel does no transposes (one-off, negligible XLA ops).
    w1t = jnp.transpose(w1)                  # (C, Cr)
    w2t = jnp.transpose(w2)                  # (Cr, C)
    b1r = b1.reshape(1, Cr)
    b2r = b2.reshape(1, C)

    nb = _pick_batch_tile(N, C * HW * 4)
    # TODO(synk): if a single image's (C, HW) slab ever exceeds VMEM, split the
    # spatial axis into a two-pass (pool, then scale) pipeline.

    out = pl.pallas_call(
        _channel_gate_kernel,
        grid=(N // nb,),
        in_specs=[
            pl.BlockSpec((nb, C, HW), lambda n: (n, 0, 0)),
            pl.BlockSpec((C, Cr), lambda n: (0, 0)),
            pl.BlockSpec((1, Cr), lambda n: (0, 0)),
            pl.BlockSpec((Cr, C), lambda n: (0, 0)),
            pl.BlockSpec((1, C), lambda n: (0, 0)),
        ],
        out_specs=pl.BlockSpec((nb, C, HW), lambda n: (n, 0, 0)),
        out_shape=jax.ShapeDtypeStruct((N, C, HW), jnp.float32),
        compiler_params=pltpu.CompilerParams(
            dimension_semantics=("parallel",),   # batch axis feeds both v7x TCs
        ),
    )(x, w1t, b1r, w2t, b2r)
    return out.reshape(N, C, H, W)


# ---------------------------------------------------------------------------
# Pure-JAX reference (same math, no Pallas) for correctness check
# ---------------------------------------------------------------------------
def reference_forward(x, w1, b1, w2, b2):
    avg = jnp.mean(x, axis=(2, 3), keepdims=True)                      # (N, C, 1, 1)
    h = jnp.einsum("oc,nchw->nohw", w1, avg) + b1.reshape(1, -1, 1, 1)
    h = jnp.maximum(h, 0.0)
    z = jnp.einsum("oc,nchw->nohw", w2, h) + b2.reshape(1, -1, 1, 1)
    g = 1.0 / (1.0 + jnp.exp(-z))
    return g * x


def init_params(key, channels, reduction=2):
    C, Cr = channels, channels // reduction
    k1, k2, k3, k4 = jax.random.split(key, 4)
    # PyTorch Conv2d weight shape (out, in, 1, 1) -> stored as (out, in).
    w1 = 0.2 * jax.random.normal(k1, (Cr, C), jnp.float32)
    b1 = 0.1 * jax.random.normal(k2, (Cr,), jnp.float32)
    w2 = 0.2 * jax.random.normal(k3, (C, Cr), jnp.float32)
    b2 = 0.1 * jax.random.normal(k4, (C,), jnp.float32)
    return w1, b1, w2, b2


if __name__ == "__main__":
    key = jax.random.PRNGKey(0)
    N, C, H, W = 2, 32, 16, 16          # small shapes; reduction=2 (module default)
    k_x, k_p = jax.random.split(key)

    x = jax.random.normal(k_x, (N, C, H, W), jnp.float32)
    w1, b1, w2, b2 = init_params(k_p, C, reduction=2)

    out = channel_gate_2d(x, w1, b1, w2, b2)
    out = jax.block_until_ready(out)

    ref = jax.block_until_ready(reference_forward(x, w1, b1, w2, b2))
    assert out.shape == (N, C, H, W), out.shape
    np.testing.assert_allclose(np.asarray(out), np.asarray(ref), rtol=1e-4, atol=1e-4)

    print("KERNEL_OK")
</pallas_src>

<mosaic_0001>
module attributes {stable_mosaic.version = 11 : i64} {
  func.func @_channel_gate_kernel(%arg0: i32, %arg1: memref<2x32x256xf32, #tpu.memory_space<vmem>>, %arg2: memref<32x16xf32, #tpu.memory_space<vmem>>, %arg3: memref<1x16xf32, #tpu.memory_space<vmem>>, %arg4: memref<16x32xf32, #tpu.memory_space<vmem>>, %arg5: memref<1x32xf32, #tpu.memory_space<vmem>>, %arg6: memref<2x32x256xf32, #tpu.memory_space<vmem>>) attributes {dimension_semantics = [#tpu.dimension_semantics<parallel>], iteration_bounds = array<i64: 1>, scalar_prefetch = 0 : i64, scratch_operands = 0 : i64, tpu.core_type = #tpu.core_type<tc>, window_params = [{transform_indices = @transform_0, window_bounds = array<i64: 2, 32, 256>}, {pipeline_mode = #tpu.pipeline_mode<synchronous>, transform_indices = @transform_1, window_bounds = array<i64: 32, 16>}, {pipeline_mode = #tpu.pipeline_mode<synchronous>, transform_indices = @transform_2, window_bounds = array<i64: 1, 16>}, {pipeline_mode = #tpu.pipeline_mode<synchronous>, transform_indices = @transform_3, window_bounds = array<i64: 16, 32>}, {pipeline_mode = #tpu.pipeline_mode<synchronous>, transform_indices = @transform_4, window_bounds = array<i64: 1, 32>}, {transform_indices = @transform_5, window_bounds = array<i64: 2, 32, 256>}]} {
    %c0 = arith.constant 0 : index
    %c0_0 = arith.constant 0 : index
    %c0_1 = arith.constant 0 : index
    %0 = vector.load %arg1[%c0, %c0_0, %c0_1] : memref<2x32x256xf32, #tpu.memory_space<vmem>>, vector<2x32x256xf32>
    %cst = arith.constant dense<0.000000e+00> : vector<2x32xf32>
    %1 = vector.multi_reduction <add>, %0, %cst [2] : vector<2x32x256xf32> to vector<2x32xf32>
    %cst_2 = arith.constant 3.906250e-03 : f32
    %2 = vector.broadcast %cst_2 : f32 to vector<2x32xf32>
    %3 = arith.mulf %1, %2 : vector<2x32xf32>
    %c0_3 = arith.constant 0 : index
    %c0_4 = arith.constant 0 : index
    %4 = vector.load %arg2[%c0_3, %c0_4] : memref<32x16xf32, #tpu.memory_space<vmem>>, vector<32x16xf32>
    %cst_5 = arith.constant dense<0.000000e+00> : vector<2x16xf32>
    %5 = tpu.matmul %3, %4, %cst_5 {dimension_numbers = #tpu.dot_dimension_numbers<[1], [0], [0], [1], [0, 0, 1, 1], [], []>, precision = #tpu.contract_precision<fp32>} : vector<2x32xf32>, vector<32x16xf32>, vector<2x16xf32> -> vector<2x16xf32>
    %c0_6 = arith.constant 0 : index
    %c0_7 = arith.constant 0 : index
    %6 = vector.load %arg3[%c0_6, %c0_7] : memref<1x16xf32, #tpu.memory_space<vmem>>, vector<1x16xf32>
    %7 = vector.broadcast %6 : vector<1x16xf32> to vector<2x16xf32>
    %8 = arith.addf %5, %7 : vector<2x16xf32>
    %cst_8 = arith.constant 0.000000e+00 : f32
    %9 = vector.broadcast %cst_8 : f32 to vector<2x16xf32>
    %10 = arith.maximumf %8, %9 : vector<2x16xf32>
    %c0_9 = arith.constant 0 : index
    %c0_10 = arith.constant 0 : index
    %11 = vector.load %arg4[%c0_9, %c0_10] : memref<16x32xf32, #tpu.memory_space<vmem>>, vector<16x32xf32>
    %cst_11 = arith.constant dense<0.000000e+00> : vector<2x32xf32>
    %12 = tpu.matmul %10, %11, %cst_11 {dimension_numbers = #tpu.dot_dimension_numbers<[1], [0], [0], [1], [0, 0, 1, 1], [], []>, precision = #tpu.contract_precision<fp32>} : vector<2x16xf32>, vector<16x32xf32>, vector<2x32xf32> -> vector<2x32xf32>
    %c0_12 = arith.constant 0 : index
    %c0_13 = arith.constant 0 : index
    %13 = vector.load %arg5[%c0_12, %c0_13] : memref<1x32xf32, #tpu.memory_space<vmem>>, vector<1x32xf32>
    %14 = vector.broadcast %13 : vector<1x32xf32> to vector<2x32xf32>
    %15 = arith.addf %12, %14 : vector<2x32xf32>
    %cst_14 = arith.constant 0.000000e+00 : f32
    %16 = vector.broadcast %cst_14 : f32 to vector<2x32xf32>
    %17 = arith.subf %16, %15 : vector<2x32xf32>
    %18 = math.exp %17 : vector<2x32xf32>
    %cst_15 = arith.constant 1.000000e+00 : f32
    %19 = vector.broadcast %cst_15 : f32 to vector<2x32xf32>
    %20 = arith.addf %19, %18 : vector<2x32xf32>
    %cst_16 = arith.constant 1.000000e+00 : f32
    %21 = vector.broadcast %cst_16 : f32 to vector<2x32xf32>
    %22 = arith.divf %21, %20 : vector<2x32xf32>
    %23 = vector.shape_cast %22 : vector<2x32xf32> to vector<2x32x1xf32>
    %24 = vector.broadcast %23 : vector<2x32x1xf32> to vector<2x32x256xf32>
    %25 = arith.mulf %0, %24 : vector<2x32x256xf32>
    %c0_17 = arith.constant 0 : index
    %c0_18 = arith.constant 0 : index
    %c0_19 = arith.constant 0 : index
    %26 = vector.load %arg6[%c0_17, %c0_18, %c0_19] : memref<2x32x256xf32, #tpu.memory_space<vmem>>, vector<2x32x256xf32>
    tpu.vector_store %arg6[%c0_17, %c0_18, %c0_19], %25 {strides = array<i32>} : memref<2x32x256xf32, #tpu.memory_space<vmem>>, vector<2x32x256xf32>,
    return
  }
  func.func @transform_0(%arg0: i32) -> (i32, i32, i32) {
    %c0_i32 = arith.constant 0 : i32
    %c0_i32_0 = arith.constant 0 : i32
    %c0_i32_1 = arith.constant 0 : i32
    return %arg0, %c0_i32, %c0_i32_0 : i32, i32, i32
  }
  func.func @transform_1(%arg0: i32) -> (i32, i32) {
    %c0_i32 = arith.constant 0 : i32
    %c0_i32_0 = arith.constant 0 : i32
    %c0_i32_1 = arith.constant 0 : i32
    return %c0_i32, %c0_i32_0 : i32, i32
  }
  func.func @transform_2(%arg0: i32) -> (i32, i32) {
    %c0_i32 = arith.constant 0 : i32
    %c0_i32_0 = arith.constant 0 : i32
    %c0_i32_1 = arith.constant 0 : i32
    return %c0_i32, %c0_i32_0 : i32, i32
  }
  func.func @transform_3(%arg0: i32) -> (i32, i32) {
    %c0_i32 = arith.constant 0 : i32
    %c0_i32_0 = arith.constant 0 : i32
    %c0_i32_1 = arith.constant 0 : i32
    return %c0_i32, %c0_i32_0 : i32, i32
  }
  func.func @transform_4(%arg0: i32) -> (i32, i32) {
    %c0_i32 = arith.constant 0 : i32
    %c0_i32_0 = arith.constant 0 : i32
    %c0_i32_1 = arith.constant 0 : i32
    return %c0_i32, %c0_i32_0 : i32, i32
  }
  func.func @transform_5(%arg0: i32) -> (i32, i32, i32) {
    %c0_i32 = arith.constant 0 : i32
    %c0_i32_0 = arith.constant 0 : i32
    %c0_i32_1 = arith.constant 0 : i32
    return %arg0, %c0_i32, %c0_i32_0 : i32, i32, i32
  }
}

</mosaic_0001>

<llo_original>
// kernel: tpu_custom_call.1
$region0: #{tpu_custom_call.1}
  #allocation0 [shape = 'u32[]', space=smem, size = 0x4, offset = 0x4, fixed_abs, tag = 'smem constant byte address 0x4 - core index']
  #allocation1 [shape = 'u32[144,128]{1,0:T(1,128)}', space=vmem, size = 0x12000, scoped, tag = 'internal scratch']
  %s0 = inlined_call_operand.hbm [shape: f32[2,32,256], index: 0, kind: input, shape index: {}]
  %s1 = inlined_call_operand.vmem [shape: f32[32,16], index: 1, kind: input, shape index: {}]
  %s2 = inlined_call_operand.vmem [shape: f32[1,16], index: 2, kind: input, shape index: {}]
  %s3 = inlined_call_operand.vmem [shape: f32[16,32], index: 3, kind: input, shape index: {}]
  %s4 = inlined_call_operand.vmem [shape: f32[1,32], index: 4, kind: input, shape index: {}]
  %s5 = inlined_call_operand.hbm [shape: f32[2,32,256], index: 5, kind: output, shape index: {}]
  %s6 = sld [smem:[#allocation0]]
  $region34: #{tpu_custom_call.1} parent=0
    _
  %s8 = ssub.s32 1, %s6
  %s9 = scalar_select 0, %s8, %s6
  $region1: #{tpu_custom_call.1} parent=0
    #allocation2 [shape = 'u8[65536]{0}', space=vmem, size = 0x10000, scoped, tag = 'input window, operand 0, single buffered']
    #allocation3 [shape = 's32[1]{0}', space=sflag, size = 0x4, scoped, tag = 'scoped memory for tpu_custom_call.1']
    #allocation4 [shape = 's32[1]{0}', space=sflag, size = 0x4, scoped, tag = 'scoped memory for tpu_custom_call.1']
    #allocation5 [shape = 'u8[65536]{0}', space=vmem, size = 0x10000, scoped, tag = 'output window, operand 0, single buffered']
    %10 = vsyncpa [#allocation3], 0
    %11 = vsyncpa [#allocation4], 0
    // Predicated region
    $region2: #{tpu_custom_call.1} parent=1 // pred_check
      _
    $region3: #{tpu_custom_call.1} parent=1 // pred_check_branch
      %13 = sbr.rel (0) target = $region5
    $region4: #{tpu_custom_call.1} parent=1 // pred_region
      %s15 = ssub.s32 2048, 2048
      %16 = vsyncadd [#allocation3], %s15
      %s17 = sshll.u32 [#allocation2], 4
      %s18 = int_to_ptr.vmem [resolvable:$true] %s17
      %23 = dma.hbm_to_vmem [thread:$0]  %s0, 2048, %s18, [#allocation3], 256, 256, 16
    $region5: #{tpu_custom_call.1} parent=1 // pred_fallthru
      _
    // Predicated region
    $region6: #{tpu_custom_call.1} parent=1 // pred_check
      _
    $region7: #{tpu_custom_call.1} parent=1 // pred_check_branch
      %25 = sbr.rel (0) target = $region9
    $region8: #{tpu_custom_call.1} parent=1 // pred_region
      _
    $region9: #{tpu_custom_call.1} parent=1 // pred_fallthru
      _
    // Predicated region
    $region10: #{tpu_custom_call.1} parent=1 // pred_check
      _
    $region11: #{tpu_custom_call.1} parent=1 // pred_check_branch
      %27 = sbr.rel (0) target = $region13
    $region12: #{tpu_custom_call.1} parent=1 // pred_region
      _
    $region13: #{tpu_custom_call.1} parent=1 // pred_fallthru
      _
    // Predicated region
    $region14: #{tpu_custom_call.1} parent=1 // pred_check
      _
    $region15: #{tpu_custom_call.1} parent=1 // pred_check_branch
      %29 = sbr.rel (0) target = $region17
    $region16: #{tpu_custom_call.1} parent=1 // pred_region
      _
    $region17: #{tpu_custom_call.1} parent=1 // pred_fallthru
      _
    // Predicated region
    $region18: #{tpu_custom_call.1} parent=1 // pred_check
      _
    $region19: #{tpu_custom_call.1} parent=1 // pred_check_branch
      %31 = sbr.rel (0) target = $region21
    $region20: #{tpu_custom_call.1} parent=1 // pred_region
      _
    $region21: #{tpu_custom_call.1} parent=1 // pred_fallthru
      _
    // Predicated region
    $region22: #{tpu_custom_call.1} parent=1 // pred_check
      _
    $region23: #{tpu_custom_call.1} parent=1 // pred_check_branch
      %33 = sbr.rel (0) target = $region25
    $region24: #{tpu_custom_call.1} parent=1 // pred_region
      %34 = dma.done [#allocation3], 2048
    $region25: #{tpu_custom_call.1} parent=1 // pred_fallthru
      _
    %v35 = vld [vmem:[#allocation2] sm:$0xff]
    %v36 = vld [vmem:[#allocation2 + $0x8] sm:$0xff]
    %v37 = vld [vmem:[#allocation2 + $0x10] sm:$0xff]
    %v38 = vld [vmem:[#allocation2 + $0x18] sm:$0xff]
    %v39 = vld [vmem:[#allocation2 + $0x20] sm:$0xff]
    %v40 = vld [vmem:[#allocation2 + $0x28] sm:$0xff]
    %v41 = vld [vmem:[#allocation2 + $0x30] sm:$0xff]
    %v42 = vld [vmem:[#allocation2 + $0x38] sm:$0xff]
    %v43 = vld [vmem:[#allocation2 + $0x40] sm:$0xff]
    %v44 = vld [vmem:[#allocation2 + $0x48] sm:$0xff]
    %v45 = vld [vmem:[#allocation2 + $0x50] sm:$0xff]
    %v46 = vld [vmem:[#allocation2 + $0x58] sm:$0xff]
    %v47 = vld [vmem:[#allocation2 + $0x60] sm:$0xff]
    %v48 = vld [vmem:[#allocation2 + $0x68] sm:$0xff]
    %v49 = vld [vmem:[#allocation2 + $0x70] sm:$0xff]
    %v50 = vld [vmem:[#allocation2 + $0x78] sm:$0xff]
    %v51 = vadd.f32 %v35, %v36
    %52 = vadd.xlane.f32.xlu0 %v51
    %v53 = vpop.xlane.xlu0 %52
    %v54 = vadd.f32 %v37, %v38
    %55 = vadd.xlane.f32.xlu0 %v54
    %v56 = vpop.xlane.xlu0 %55
    %v57 = vadd.f32 %v39, %v40
    %58 = vadd.xlane.f32.xlu0 %v57
    %v59 = vpop.xlane.xlu0 %58
    %v60 = vadd.f32 %v41, %v42
    %61 = vadd.xlane.f32.xlu0 %v60
    %v62 = vpop.xlane.xlu0 %61
    %v63 = vadd.f32 %v43, %v44
    %64 = vadd.xlane.f32.xlu0 %v63
    %v65 = vpop.xlane.xlu0 %64
    %v66 = vadd.f32 %v45, %v46
    %67 = vadd.xlane.f32.xlu0 %v66
    %v68 = vpop.xlane.xlu0 %67
    %v69 = vadd.f32 %v47, %v48
    %70 = vadd.xlane.f32.xlu0 %v69
    %v71 = vpop.xlane.xlu0 %70
    %v72 = vadd.f32 %v49, %v50
    %73 = vadd.xlane.f32.xlu0 %v72
    %v74 = vpop.xlane.xlu0 %73
    %v75 = vmul.f32 %v53, 0.00390625
    %v76 = vmul.f32 %v56, 0.00390625
    %v77 = vmul.f32 %v59, 0.00390625
    %v78 = vmul.f32 %v62, 0.00390625
    %v79 = vmul.f32 %v65, 0.00390625
    %v80 = vmul.f32 %v68, 0.00390625
    %v81 = vmul.f32 %v71, 0.00390625
    %v82 = vmul.f32 %v74, 0.00390625
    %v83 = vld [vmem:[%s1] sm:$0xff]
    %v84 = vld [vmem:[%s1 + $0x8] sm:$0xff]
    %v85 = vld [vmem:[%s1 + $0x10] sm:$0xff]
    %v86 = vld [vmem:[%s1 + $0x18] sm:$0xff]
    %v87 = vld [vmem:[%s2] sm:$0x1]
    %v89 = vlaneseq
    %v90 = vshrl.u32 %v89, 7
    %v91 = vsub.s32 0, %v90
    %v92 = vrot.slane %v87, %v91
    %v102 = vlaneseq
    %v103 = vand.u32 %v102, 127
    %v104 = vlaneseq
    %v105 = vshrl.u32 %v104, 7
    %v106 = vsub.s32 %v103, %v105
    %v107 = vrot.slane %v75, %v106
    %v108 = vadd.s32 %v103, 4294967288
    %v109 = vlaneseq
    %v110 = vshrl.u32 %v109, 7
    %v111 = vsub.s32 %v108, %v110
    %v112 = vrot.slane %v76, %v111
    %vm113 = vcmask 130112
    %v114 = vsel %vm113, %v112, %v107
    %v115 = vadd.s32 %v103, 4294967280
    %v116 = vlaneseq
    %v117 = vshrl.u32 %v116, 7
    %v118 = vsub.s32 %v115, %v117
    %v119 = vrot.slane %v77, %v118
    %vm120 = vcmask 195712
    %v121 = vsel %vm120, %v119, %v114
    %v122 = vadd.s32 %v103, 4294967272
    %v123 = vlaneseq
    %v124 = vshrl.u32 %v123, 7
    %v125 = vsub.s32 %v122, %v124
    %v126 = vrot.slane %v78, %v125
    %vm127 = vcmask 261312
    %v128 = vsel %vm127, %v126, %v121
    %v129 = vlaneseq
    %v130 = vshrl.u32 %v129, 7
    %v131 = vsub.s32 %v103, %v130
    %v132 = vrot.slane %v79, %v131
    %v133 = vlaneseq
    %v134 = vshrl.u32 %v133, 7
    %v135 = vsub.s32 %v108, %v134
    %v136 = vrot.slane %v80, %v135
    %v137 = vsel %vm113, %v136, %v132
    %v138 = vlaneseq
    %v139 = vshrl.u32 %v138, 7
    %v140 = vsub.s32 %v115, %v139
    %v141 = vrot.slane %v81, %v140
    %v142 = vsel %vm120, %v141, %v137
    %v143 = vlaneseq
    %v144 = vshrl.u32 %v143, 7
    %v145 = vsub.s32 %v122, %v144
    %v146 = vrot.slane %v82, %v145
    %v147 = vsel %vm127, %v146, %v142
    %vm148 = vcmask 1041409
    %v149 = vsel %vm148, %v147, %v128
    %vm150 = vcmask 261120
    %v151 = vsel %vm150, %v149, 0
    %153 = vmatprep.subr.mxu0 0.0
    %154 = vmatpush1.msra.mxu0 0.0
    %155 = vmatprep.subr.mxu0 0.0
    %156 = vmatpush1.msra.mxu0 0.0
    %157 = vmatprep.subr.mxu0 0.0
    %158 = vmatpush1.msra.mxu0 0.0
    %159 = vmatprep.subr.mxu0 0.0
    %160 = vmatpush1.msra.mxu0 0.0
    %161 = vmatprep.subr.mxu0 0.0
    %162 = vmatpush1.msra.mxu0 0.0
    %163 = vmatprep.subr.mxu0 0.0
    %164 = vmatpush1.msra.mxu0 0.0
    %165 = vmatprep.subr.mxu0 0.0
    %166 = vmatpush1.msra.mxu0 0.0
    %167 = vmatprep.subr.mxu0 0.0
    %168 = vmatpush1.msra.mxu0 0.0
    %169 = vmatprep.subr.mxu0 0.0
    %170 = vmatpush1.msra.mxu0 0.0
    %171 = vmatprep.subr.mxu0 0.0
    %172 = vmatpush1.msra.mxu0 0.0
    %173 = vmatprep.subr.mxu0 0.0
    %174 = vmatpush1.msra.mxu0 0.0
    %175 = vmatprep.subr.mxu0 0.0
    %176 = vmatpush1.msra.mxu0 0.0
    %177 = vmatprep.subr.mxu0 0.0
    %v178 = vand.u32 %v86, 4294901760
    %179 = vmatpush1.msra.mxu0 %v178
    %180 = vmatprep.subr.mxu0 0.0
    %v181 = vand.u32 %v85, 4294901760
    %182 = vmatpush1.msra.mxu0 %v181
    %183 = vmatprep.subr.mxu0 0.0
    %v184 = vand.u32 %v84, 4294901760
    %185 = vmatpush1.msra.mxu0 %v184
    %186 = vmatprep.subr.mxu0 0.0
    %v187 = vand.u32 %v83, 4294901760
    %188 = vmatpush1.msra.mxu0 %v187
    %189 = vmatprep.subr.mxu0 0.0
    %190 = vmatpush2.msra.mxu0 0.0
    %191 = vmatprep.subr.mxu0 0.0
    %192 = vmatpush2.msra.mxu0 0.0
    %193 = vmatprep.subr.mxu0 0.0
    %194 = vmatpush2.msra.mxu0 0.0
    %195 = vmatprep.subr.mxu0 0.0
    %196 = vmatpush2.msra.mxu0 0.0
    %197 = vmatprep.subr.mxu0 0.0
    %198 = vmatpush2.msra.mxu0 0.0
    %199 = vmatprep.subr.mxu0 0.0
    %200 = vmatpush2.msra.mxu0 0.0
    %201 = vmatprep.subr.mxu0 0.0
    %202 = vmatpush2.msra.mxu0 0.0
    %203 = vmatprep.subr.mxu0 0.0
    %204 = vmatpush2.msra.mxu0 0.0
    %205 = vmatprep.subr.mxu0 0.0
    %206 = vmatpush2.msra.mxu0 0.0
    %207 = vmatprep.subr.mxu0 0.0
    %208 = vmatpush2.msra.mxu0 0.0
    %209 = vmatprep.subr.mxu0 0.0
    %210 = vmatpush2.msra.mxu0 0.0
    %211 = vmatprep.subr.mxu0 0.0
    %212 = vmatpush2.msra.mxu0 0.0
    %213 = vmatprep.subr.mxu0 0.0
    %214 = vmatpush2.msra.mxu0 0.0
    %215 = vmatprep.subr.mxu0 0.0
    %216 = vmatpush2.msra.mxu0 0.0
    %217 = vmatprep.subr.mxu0 0.0
    %218 = vmatpush2.msra.mxu0 0.0
    %219 = vmatprep.subr.mxu0 0.0
    %220 = vmatpush2.msra.mxu0 0.0
    %221 = vmatprep.mubr.f32.mxu0 0.0
    %v222 = vand.u32 %v151, 4294901760
    %v223 = vsub.f32 %v151, %v222
    %v224 = vand.u32 %v223, 4294901760
    %v225 = vsub.f32 %v223, %v224
    %v226 = vand.u32 %v225, 4294901760
    %227 = vmatmul.mubr.f32.gmra.mxu0 %v226
    %v228 = vpop.f32.mrf.mxu0
    %v229 = vadd.f32 %v92, %v228
    %v230 = vpop.f32.mrf.mxu0
    %231 = vdwg.mxu0
    %232 = vmatprep.subr.mxu0 0.0
    %233 = vmatpush1.msra.mxu0 0.0
    %234 = vmatprep.subr.mxu0 0.0
    %235 = vmatpush1.msra.mxu0 0.0
    %236 = vmatprep.subr.mxu0 0.0
    %237 = vmatpush1.msra.mxu0 0.0
    %238 = vmatprep.subr.mxu0 0.0
    %239 = vmatpush1.msra.mxu0 0.0
    %240 = vmatprep.subr.mxu0 0.0
    %241 = vmatpush1.msra.mxu0 0.0
    %242 = vmatprep.subr.mxu0 0.0
    %243 = vmatpush1.msra.mxu0 0.0
    %244 = vmatprep.subr.mxu0 0.0
    %245 = vmatpush1.msra.mxu0 0.0
    %246 = vmatprep.subr.mxu0 0.0
    %247 = vmatpush1.msra.mxu0 0.0
    %248 = vmatprep.subr.mxu0 0.0
    %249 = vmatpush1.msra.mxu0 0.0
    %250 = vmatprep.subr.mxu0 0.0
    %251 = vmatpush1.msra.mxu0 0.0
    %252 = vmatprep.subr.mxu0 0.0
    %253 = vmatpush1.msra.mxu0 0.0
    %254 = vmatprep.subr.mxu0 0.0
    %255 = vmatpush1.msra.mxu0 0.0
    %256 = vmatprep.subr.mxu0 0.0
    %v257 = vand.u32 %v86, 4294901760
    %v258 = vsub.f32 %v86, %v257
    %v259 = vand.u32 %v258, 4294901760
    %v260 = vsub.f32 %v258, %v259
    %v261 = vand.u32 %v260, 4294901760
    %262 = vmatpush1.msra.mxu0 %v261
    %263 = vmatprep.subr.mxu0 0.0
    %v264 = vand.u32 %v85, 4294901760
    %v265 = vsub.f32 %v85, %v264
    %v266 = vand.u32 %v265, 4294901760
    %v267 = vsub.f32 %v265, %v266
    %v268 = vand.u32 %v267, 4294901760
    %269 = vmatpush1.msra.mxu0 %v268
    %270 = vmatprep.subr.mxu0 0.0
    %v271 = vand.u32 %v84, 4294901760
    %v272 = vsub.f32 %v84, %v271
    %v273 = vand.u32 %v272, 4294901760
    %v274 = vsub.f32 %v272, %v273
    %v275 = vand.u32 %v274, 4294901760
    %276 = vmatpush1.msra.mxu0 %v275
    %277 = vmatprep.subr.mxu0 0.0
    %v278 = vand.u32 %v83, 4294901760
    %v279 = vsub.f32 %v83, %v278
    %v280 = vand.u32 %v279, 4294901760
    %v281 = vsub.f32 %v279, %v280
    %v282 = vand.u32 %v281, 4294901760
    %283 = vmatpush1.msra.mxu0 %v282
    %284 = vmatprep.subr.mxu0 0.0
    %285 = vmatpush2.msra.mxu0 0.0
    %286 = vmatprep.subr.mxu0 0.0
    %287 = vmatpush2.msra.mxu0 0.0
    %288 = vmatprep.subr.mxu0 0.0
    %289 = vmatpush2.msra.mxu0 0.0
    %290 = vmatprep.subr.mxu0 0.0
    %291 = vmatpush2.msra.mxu0 0.0
    %292 = vmatprep.subr.mxu0 0.0
    %293 = vmatpush2.msra.mxu0 0.0
    %294 = vmatprep.subr.mxu0 0.0
    %295 = vmatpush2.msra.mxu0 0.0
    %296 = vmatprep.subr.mxu0 0.0
    %297 = vmatpush2.msra.mxu0 0.0
    %298 = vmatprep.subr.mxu0 0.0
    %299 = vmatpush2.msra.mxu0 0.0
    %300 = vmatprep.subr.mxu0 0.0
    %301 = vmatpush2.msra.mxu0 0.0
    %302 = vmatprep.subr.mxu0 0.0
    %303 = vmatpush2.msra.mxu0 0.0
    %304 = vmatprep.subr.mxu0 0.0
    %305 = vmatpush2.msra.mxu0 0.0
    %306 = vmatprep.subr.mxu0 0.0
    %307 = vmatpush2.msra.mxu0 0.0
    %308 = vmatprep.subr.mxu0 0.0
    %309 = vmatpush2.msra.mxu0 0.0
    %310 = vmatprep.subr.mxu0 0.0
    %311 = vmatpush2.msra.mxu0 0.0
    %312 = vmatprep.subr.mxu0 0.0
    %313 = vmatpush2.msra.mxu0 0.0
    %314 = vmatprep.subr.mxu0 0.0
    %315 = vmatpush2.msra.mxu0 0.0
    %316 = vmatprep.mubr.f32.mxu0 0.0
    %v317 = vand.u32 %v151, 4294901760
    %318 = vmatmul.mubr.f32.gmra.mxu0 %v317
    %v319 = vpop.f32.mrf.mxu0
    %v320 = vadd.f32 %v229, %v319
    %v321 = vpop.f32.mrf.mxu0
    %322 = vdwg.mxu0
    %323 = vmatprep.subr.mxu0 0.0
    %324 = vmatpush1.msra.mxu0 0.0
    %325 = vmatprep.subr.mxu0 0.0
    %326 = vmatpush1.msra.mxu0 0.0
    %327 = vmatprep.subr.mxu0 0.0
    %328 = vmatpush1.msra.mxu0 0.0
    %329 = vmatprep.subr.mxu0 0.0
    %330 = vmatpush1.msra.mxu0 0.0
    %331 = vmatprep.subr.mxu0 0.0
    %332 = vmatpush1.msra.mxu0 0.0
    %333 = vmatprep.subr.mxu0 0.0
    %334 = vmatpush1.msra.mxu0 0.0
    %335 = vmatprep.subr.mxu0 0.0
    %336 = vmatpush1.msra.mxu0 0.0
    %337 = vmatprep.subr.mxu0 0.0
    %338 = vmatpush1.msra.mxu0 0.0
    %339 = vmatprep.subr.mxu0 0.0
    %340 = vmatpush1.msra.mxu0 0.0
    %341 = vmatprep.subr.mxu0 0.0
    %342 = vmatpush1.msra.mxu0 0.0
    %343 = vmatprep.subr.mxu0 0.0
    %344 = vmatpush1.msra.mxu0 0.0
    %345 = vmatprep.subr.mxu0 0.0
    %346 = vmatpush1.msra.mxu0 0.0
    %347 = vmatprep.subr.mxu0 0.0
    %v348 = vand.u32 %v86, 4294901760
    %v349 = vsub.f32 %v86, %v348
    %350 = vmatpush1.msra.mxu0 %v349
    %351 = vmatprep.subr.mxu0 0.0
    %v352 = vand.u32 %v85, 4294901760
    %v353 = vsub.f32 %v85, %v352
    %354 = vmatpush1.msra.mxu0 %v353
    %355 = vmatprep.subr.mxu0 0.0
    %v356 = vand.u32 %v84, 4294901760
    %v357 = vsub.f32 %v84, %v356
    %358 = vmatpush1.msra.mxu0 %v357
    %359 = vmatprep.subr.mxu0 0.0
    %v360 = vand.u32 %v83, 4294901760
    %v361 = vsub.f32 %v83, %v360
    %362 = vmatpush1.msra.mxu0 %v361
    %363 = vmatprep.subr.mxu0 0.0
    %364 = vmatpush2.msra.mxu0 0.0
    %365 = vmatprep.subr.mxu0 0.0
    %366 = vmatpush2.msra.mxu0 0.0
    %367 = vmatprep.subr.mxu0 0.0
    %368 = vmatpush2.msra.mxu0 0.0
    %369 = vmatprep.subr.mxu0 0.0
    %370 = vmatpush2.msra.mxu0 0.0
    %371 = vmatprep.subr.mxu0 0.0
    %372 = vmatpush2.msra.mxu0 0.0
    %373 = vmatprep.subr.mxu0 0.0
    %374 = vmatpush2.msra.mxu0 0.0
    %375 = vmatprep.subr.mxu0 0.0
    %376 = vmatpush2.msra.mxu0 0.0
    %377 = vmatprep.subr.mxu0 0.0
    %378 = vmatpush2.msra.mxu0 0.0
    %379 = vmatprep.subr.mxu0 0.0
    %380 = vmatpush2.msra.mxu0 0.0
    %381 = vmatprep.subr.mxu0 0.0
    %382 = vmatpush2.msra.mxu0 0.0
    %383 = vmatprep.subr.mxu0 0.0
    %384 = vmatpush2.msra.mxu0 0.0
    %385 = vmatprep.subr.mxu0 0.0
    %386 = vmatpush2.msra.mxu0 0.0
    %387 = vmatprep.subr.mxu0 0.0
    %388 = vmatpush2.msra.mxu0 0.0
    %389 = vmatprep.subr.mxu0 0.0
    %390 = vmatpush2.msra.mxu0 0.0
    %391 = vmatprep.subr.mxu0 0.0
    %392 = vmatpush2.msra.mxu0 0.0
    %393 = vmatprep.subr.mxu0 0.0
    %394 = vmatpush2.msra.mxu0 0.0
    %395 = vmatprep.mubr.f32.mxu0 0.0
    %v396 = vand.u32 %v151, 4294901760
    %v397 = vsub.f32 %v151, %v396
    %398 = vmatmul.mubr.f32.gmra.mxu0 %v397
    %v399 = vpop.f32.mrf.mxu0
    %v400 = vadd.f32 %v320, %v399
    %v401 = vpop.f32.mrf.mxu0
    %402 = vdwg.mxu0
    %403 = vmatprep.subr.mxu0 0.0
    %404 = vmatpush1.msra.mxu0 0.0
    %405 = vmatprep.subr.mxu0 0.0
    %406 = vmatpush1.msra.mxu0 0.0
    %407 = vmatprep.subr.mxu0 0.0
    %408 = vmatpush1.msra.mxu0 0.0
    %409 = vmatprep.subr.mxu0 0.0
    %410 = vmatpush1.msra.mxu0 0.0
    %411 = vmatprep.subr.mxu0 0.0
    %412 = vmatpush1.msra.mxu0 0.0
    %413 = vmatprep.subr.mxu0 0.0
    %414 = vmatpush1.msra.mxu0 0.0
    %415 = vmatprep.subr.mxu0 0.0
    %416 = vmatpush1.msra.mxu0 0.0
    %417 = vmatprep.subr.mxu0 0.0
    %418 = vmatpush1.msra.mxu0 0.0
    %419 = vmatprep.subr.mxu0 0.0
    %420 = vmatpush1.msra.mxu0 0.0
    %421 = vmatprep.subr.mxu0 0.0
    %422 = vmatpush1.msra.mxu0 0.0
    %423 = vmatprep.subr.mxu0 0.0
    %424 = vmatpush1.msra.mxu0 0.0
    %425 = vmatprep.subr.mxu0 0.0
    %426 = vmatpush1.msra.mxu0 0.0
    %427 = vmatprep.subr.mxu0 0.0
    %v428 = vand.u32 %v86, 4294901760
    %429 = vmatpush1.msra.mxu0 %v428
    %430 = vmatprep.subr.mxu0 0.0
    %v431 = vand.u32 %v85, 4294901760
    %432 = vmatpush1.msra.mxu0 %v431
    %433 = vmatprep.subr.mxu0 0.0
    %v434 = vand.u32 %v84, 4294901760
    %435 = vmatpush1.msra.mxu0 %v434
    %436 = vmatprep.subr.mxu0 0.0
    %v437 = vand.u32 %v83, 4294901760
    %438 = vmatpush1.msra.mxu0 %v437
    %439 = vmatprep.subr.mxu0 0.0
    %440 = vmatpush2.msra.mxu0 0.0
    %441 = vmatprep.subr.mxu0 0.0
    %442 = vmatpush2.msra.mxu0 0.0
    %443 = vmatprep.subr.mxu0 0.0
    %444 = vmatpush2.msra.mxu0 0.0
    %445 = vmatprep.subr.mxu0 0.0
    %446 = vmatpush2.msra.mxu0 0.0
    %447 = vmatprep.subr.mxu0 0.0
    %448 = vmatpush2.msra.mxu0 0.0
    %449 = vmatprep.subr.mxu0 0.0
    %450 = vmatpush2.msra.mxu0 0.0
    %451 = vmatprep.subr.mxu0 0.0
    %452 = vmatpush2.msra.mxu0 0.0
    %453 = vmatprep.subr.mxu0 0.0
    %454 = vmatpush2.msra.mxu0 0.0
    %455 = vmatprep.subr.mxu0 0.0
    %456 = vmatpush2.msra.mxu0 0.0
    %457 = vmatprep.subr.mxu0 0.0
    %458 = vmatpush2.msra.mxu0 0.0
    %459 = vmatprep.subr.mxu0 0.0
    %460 = vmatpush2.msra.mxu0 0.0
    %461 = vmatprep.subr.mxu0 0.0
    %462 = vmatpush2.msra.mxu0 0.0
    %463 = vmatprep.subr.mxu0 0.0
    %464 = vmatpush2.msra.mxu0 0.0
    %465 = vmatprep.subr.mxu0 0.0
    %466 = vmatpush2.msra.mxu0 0.0
    %467 = vmatprep.subr.mxu0 0.0
    %468 = vmatpush2.msra.mxu0 0.0
    %469 = vmatprep.subr.mxu0 0.0
    %470 = vmatpush2.msra.mxu0 0.0
    %471 = vmatprep.mubr.f32.mxu0 0.0
    %v472 = vand.u32 %v151, 4294901760
    %v473 = vsub.f32 %v151, %v472
    %v474 = vand.u32 %v473, 4294901760
    %475 = vmatmul.mubr.f32.gmra.mxu0 %v474
    %v476 = vpop.f32.mrf.mxu0
    %v477 = vadd.f32 %v400, %v476
    %v478 = vpop.f32.mrf.mxu0
    %479 = vdwg.mxu0
    %480 = vmatprep.subr.mxu0 0.0
    %481 = vmatpush1.msra.mxu0 0.0
    %482 = vmatprep.subr.mxu0 0.0
    %483 = vmatpush1.msra.mxu0 0.0
    %484 = vmatprep.subr.mxu0 0.0
    %485 = vmatpush1.msra.mxu0 0.0
    %486 = vmatprep.subr.mxu0 0.0
    %487 = vmatpush1.msra.mxu0 0.0
    %488 = vmatprep.subr.mxu0 0.0
    %489 = vmatpush1.msra.mxu0 0.0
    %490 = vmatprep.subr.mxu0 0.0
    %491 = vmatpush1.msra.mxu0 0.0
    %492 = vmatprep.subr.mxu0 0.0
    %493 = vmatpush1.msra.mxu0 0.0
    %494 = vmatprep.subr.mxu0 0.0
    %495 = vmatpush1.msra.mxu0 0.0
    %496 = vmatprep.subr.mxu0 0.0
    %497 = vmatpush1.msra.mxu0 0.0
    %498 = vmatprep.subr.mxu0 0.0
    %499 = vmatpush1.msra.mxu0 0.0
    %500 = vmatprep.subr.mxu0 0.0
    %501 = vmatpush1.msra.mxu0 0.0
    %502 = vmatprep.subr.mxu0 0.0
    %503 = vmatpush1.msra.mxu0 0.0
    %504 = vmatprep.subr.mxu0 0.0
    %v505 = vand.u32 %v86, 4294901760
    %v506 = vsub.f32 %v86, %v505
    %v507 = vand.u32 %v506, 4294901760
    %508 = vmatpush1.msra.mxu0 %v507
    %509 = vmatprep.subr.mxu0 0.0
    %v510 = vand.u32 %v85, 4294901760
    %v511 = vsub.f32 %v85, %v510
    %v512 = vand.u32 %v511, 4294901760
    %513 = vmatpush1.msra.mxu0 %v512
    %514 = vmatprep.subr.mxu0 0.0
    %v515 = vand.u32 %v84, 4294901760
    %v516 = vsub.f32 %v84, %v515
    %v517 = vand.u32 %v516, 4294901760
    %518 = vmatpush1.msra.mxu0 %v517
    %519 = vmatprep.subr.mxu0 0.0
    %v520 = vand.u32 %v83, 4294901760
    %v521 = vsub.f32 %v83, %v520
    %v522 = vand.u32 %v521, 4294901760
    %523 = vmatpush1.msra.mxu0 %v522
    %524 = vmatprep.subr.mxu0 0.0
    %525 = vmatpush2.msra.mxu0 0.0
    %526 = vmatprep.subr.mxu0 0.0
    %527 = vmatpush2.msra.mxu0 0.0
    %528 = vmatprep.subr.mxu0 0.0
    %529 = vmatpush2.msra.mxu0 0.0
    %530 = vmatprep.subr.mxu0 0.0
    %531 = vmatpush2.msra.mxu0 0.0
    %532 = vmatprep.subr.mxu0 0.0
    %533 = vmatpush2.msra.mxu0 0.0
    %534 = vmatprep.subr.mxu0 0.0
    %535 = vmatpush2.msra.mxu0 0.0
    %536 = vmatprep.subr.mxu0 0.0
    %537 = vmatpush2.msra.mxu0 0.0
    %538 = vmatprep.subr.mxu0 0.0
    %539 = vmatpush2.msra.mxu0 0.0
    %540 = vmatprep.subr.mxu0 0.0
    %541 = vmatpush2.msra.mxu0 0.0
    %542 = vmatprep.subr.mxu0 0.0
    %543 = vmatpush2.msra.mxu0 0.0
    %544 = vmatprep.subr.mxu0 0.0
    %545 = vmatpush2.msra.mxu0 0.0
    %546 = vmatprep.subr.mxu0 0.0
    %547 = vmatpush2.msra.mxu0 0.0
    %548 = vmatprep.subr.mxu0 0.0
    %549 = vmatpush2.msra.mxu0 0.0
    %550 = vmatprep.subr.mxu0 0.0
    %551 = vmatpush2.msra.mxu0 0.0
    %552 = vmatprep.subr.mxu0 0.0
    %553 = vmatpush2.msra.mxu0 0.0
    %554 = vmatprep.subr.mxu0 0.0
    %555 = vmatpush2.msra.mxu0 0.0
    %556 = vmatprep.mubr.f32.mxu0 0.0
    %v557 = vand.u32 %v151, 4294901760
    %558 = vmatmul.mubr.f32.gmra.mxu0 %v557
    %v559 = vpop.f32.mrf.mxu0
    %v560 = vadd.f32 %v477, %v559
    %v561 = vpop.f32.mrf.mxu0
    %562 = vdwg.mxu0
    %563 = vmatprep.subr.mxu0 0.0
    %564 = vmatpush1.msra.mxu0 0.0
    %565 = vmatprep.subr.mxu0 0.0
    %566 = vmatpush1.msra.mxu0 0.0
    %567 = vmatprep.subr.mxu0 0.0
    %568 = vmatpush1.msra.mxu0 0.0
    %569 = vmatprep.subr.mxu0 0.0
    %570 = vmatpush1.msra.mxu0 0.0
    %571 = vmatprep.subr.mxu0 0.0
    %572 = vmatpush1.msra.mxu0 0.0
    %573 = vmatprep.subr.mxu0 0.0
    %574 = vmatpush1.msra.mxu0 0.0
    %575 = vmatprep.subr.mxu0 0.0
    %576 = vmatpush1.msra.mxu0 0.0
    %577 = vmatprep.subr.mxu0 0.0
    %578 = vmatpush1.msra.mxu0 0.0
    %579 = vmatprep.subr.mxu0 0.0
    %580 = vmatpush1.msra.mxu0 0.0
    %581 = vmatprep.subr.mxu0 0.0
    %582 = vmatpush1.msra.mxu0 0.0
    %583 = vmatprep.subr.mxu0 0.0
    %584 = vmatpush1.msra.mxu0 0.0
    %585 = vmatprep.subr.mxu0 0.0
    %586 = vmatpush1.msra.mxu0 0.0
    %587 = vmatprep.subr.mxu0 0.0
    %v588 = vand.u32 %v86, 4294901760
    %589 = vmatpush1.msra.mxu0 %v588
    %590 = vmatprep.subr.mxu0 0.0
    %v591 = vand.u32 %v85, 4294901760
    %592 = vmatpush1.msra.mxu0 %v591
    %593 = vmatprep.subr.mxu0 0.0
    %v594 = vand.u32 %v84, 4294901760
    %595 = vmatpush1.msra.mxu0 %v594
    %596 = vmatprep.subr.mxu0 0.0
    %v597 = vand.u32 %v83, 4294901760
    %598 = vmatpush1.msra.mxu0 %v597
    %599 = vmatprep.subr.mxu0 0.0
    %600 = vmatpush2.msra.mxu0 0.0
    %601 = vmatprep.subr.mxu0 0.0
    %602 = vmatpush2.msra.mxu0 0.0
    %603 = vmatprep.subr.mxu0 0.0
    %604 = vmatpush2.msra.mxu0 0.0
    %605 = vmatprep.subr.mxu0 0.0
    %606 = vmatpush2.msra.mxu0 0.0
    %607 = vmatprep.subr.mxu0 0.0
    %608 = vmatpush2.msra.mxu0 0.0
    %609 = vmatprep.subr.mxu0 0.0
    %610 = vmatpush2.msra.mxu0 0.0
    %611 = vmatprep.subr.mxu0 0.0
    %612 = vmatpush2.msra.mxu0 0.0
    %613 = vmatprep.subr.mxu0 0.0
    %614 = vmatpush2.msra.mxu0 0.0
    %615 = vmatprep.subr.mxu0 0.0
    %616 = vmatpush2.msra.mxu0 0.0
    %617 = vmatprep.subr.mxu0 0.0
    %618 = vmatpush2.msra.mxu0 0.0
    %619 = vmatprep.subr.mxu0 0.0
    %620 = vmatpush2.msra.mxu0 0.0
    %621 = vmatprep.subr.mxu0 0.0
    %622 = vmatpush2.msra.mxu0 0.0
    %623 = vmatprep.subr.mxu0 0.0
    %624 = vmatpush2.msra.mxu0 0.0
    %625 = vmatprep.subr.mxu0 0.0
    %626 = vmatpush2.msra.mxu0 0.0
    %627 = vmatprep.subr.mxu0 0.0
    %628 = vmatpush2.msra.mxu0 0.0
    %629 = vmatprep.subr.mxu0 0.0
    %630 = vmatpush2.msra.mxu0 0.0
    %631 = vmatprep.mubr.f32.mxu0 0.0
    %v632 = vand.u32 %v151, 4294901760
    %633 = vmatmul.mubr.f32.gmra.mxu0 %v632
    %v634 = vpop.f32.mrf.mxu0
    %v635 = vadd.f32 %v560, %v634
    %v636 = vpop.f32.mrf.mxu0
    %637 = vdwg.mxu0
    %v638 = vmax.f32 %v635, 0.0
    %v639 = vld [vmem:[%s3] sm:$0xff]
    %v640 = vld [vmem:[%s3 + $0x8] sm:$0xff]
    %v641 = vld [vmem:[%s4] sm:$0x1]
    %v643 = vlaneseq
    %v644 = vshrl.u32 %v643, 7
    %v645 = vsub.s32 0, %v644
    %v646 = vrot.slane %v641, %v645
    %vm648 = vcmask 130048
    %v650 = vsel %vm648, %v638, 0
    %652 = vmatprep.subr.mxu0 0.0
    %653 = vmatpush1.msra.mxu0 0.0
    %654 = vmatprep.subr.mxu0 0.0
    %655 = vmatpush1.msra.mxu0 0.0
    %656 = vmatprep.subr.mxu0 0.0
    %657 = vmatpush1.msra.mxu0 0.0
    %658 = vmatprep.subr.mxu0 0.0
    %659 = vmatpush1.msra.mxu0 0.0
    %660 = vmatprep.subr.mxu0 0.0
    %661 = vmatpush1.msra.mxu0 0.0
    %662 = vmatprep.subr.mxu0 0.0
    %663 = vmatpush1.msra.mxu0 0.0
    %664 = vmatprep.subr.mxu0 0.0
    %665 = vmatpush1.msra.mxu0 0.0
    %666 = vmatprep.subr.mxu0 0.0
    %667 = vmatpush1.msra.mxu0 0.0
    %668 = vmatprep.subr.mxu0 0.0
    %669 = vmatpush1.msra.mxu0 0.0
    %670 = vmatprep.subr.mxu0 0.0
    %671 = vmatpush1.msra.mxu0 0.0
    %672 = vmatprep.subr.mxu0 0.0
    %673 = vmatpush1.msra.mxu0 0.0
    %674 = vmatprep.subr.mxu0 0.0
    %675 = vmatpush1.msra.mxu0 0.0
    %676 = vmatprep.subr.mxu0 0.0
    %677 = vmatpush1.msra.mxu0 0.0
    %678 = vmatprep.subr.mxu0 0.0
    %679 = vmatpush1.msra.mxu0 0.0
    %680 = vmatprep.subr.mxu0 0.0
    %v681 = vand.u32 %v640, 4294901760
    %682 = vmatpush1.msra.mxu0 %v681
    %683 = vmatprep.subr.mxu0 0.0
    %v684 = vand.u32 %v639, 4294901760
    %685 = vmatpush1.msra.mxu0 %v684
    %686 = vmatprep.subr.mxu0 0.0
    %687 = vmatpush2.msra.mxu0 0.0
    %688 = vmatprep.subr.mxu0 0.0
    %689 = vmatpush2.msra.mxu0 0.0
    %690 = vmatprep.subr.mxu0 0.0
    %691 = vmatpush2.msra.mxu0 0.0
    %692 = vmatprep.subr.mxu0 0.0
    %693 = vmatpush2.msra.mxu0 0.0
    %694 = vmatprep.subr.mxu0 0.0
    %695 = vmatpush2.msra.mxu0 0.0
    %696 = vmatprep.subr.mxu0 0.0
    %697 = vmatpush2.msra.mxu0 0.0
    %698 = vmatprep.subr.mxu0 0.0
    %699 = vmatpush2.msra.mxu0 0.0
    %700 = vmatprep.subr.mxu0 0.0
    %701 = vmatpush2.msra.mxu0 0.0
    %702 = vmatprep.subr.mxu0 0.0
    %703 = vmatpush2.msra.mxu0 0.0
    %704 = vmatprep.subr.mxu0 0.0
    %705 = vmatpush2.msra.mxu0 0.0
    %706 = vmatprep.subr.mxu0 0.0
    %707 = vmatpush2.msra.mxu0 0.0
    %708 = vmatprep.subr.mxu0 0.0
    %709 = vmatpush2.msra.mxu0 0.0
    %710 = vmatprep.subr.mxu0 0.0
    %711 = vmatpush2.msra.mxu0 0.0
    %712 = vmatprep.subr.mxu0 0.0
    %713 = vmatpush2.msra.mxu0 0.0
    %714 = vmatprep.subr.mxu0 0.0
    %715 = vmatpush2.msra.mxu0 0.0
    %716 = vmatprep.subr.mxu0 0.0
    %717 = vmatpush2.msra.mxu0 0.0
    %718 = vmatprep.mubr.f32.mxu0 0.0
    %v719 = vand.u32 %v650, 4294901760
    %v720 = vsub.f32 %v650, %v719
    %v721 = vand.u32 %v720, 4294901760
    %v722 = vsub.f32 %v720, %v721
    %v723 = vand.u32 %v722, 4294901760
    %724 = vmatmul.mubr.f32.gmra.mxu0 %v723
    %v725 = vpop.f32.mrf.mxu0
    %v726 = vadd.f32 %v646, %v725
    %v727 = vpop.f32.mrf.mxu0
    %728 = vdwg.mxu0
    %729 = vmatprep.subr.mxu0 0.0
    %730 = vmatpush1.msra.mxu0 0.0
    %731 = vmatprep.subr.mxu0 0.0
    %732 = vmatpush1.msra.mxu0 0.0
    %733 = vmatprep.subr.mxu0 0.0
    %734 = vmatpush1.msra.mxu0 0.0
    %735 = vmatprep.subr.mxu0 0.0
    %736 = vmatpush1.msra.mxu0 0.0
    %737 = vmatprep.subr.mxu0 0.0
    %738 = vmatpush1.msra.mxu0 0.0
    %739 = vmatprep.subr.mxu0 0.0
    %740 = vmatpush1.msra.mxu0 0.0
    %741 = vmatprep.subr.mxu0 0.0
    %742 = vmatpush1.msra.mxu0 0.0
    %743 = vmatprep.subr.mxu0 0.0
    %744 = vmatpush1.msra.mxu0 0.0
    %745 = vmatprep.subr.mxu0 0.0
    %746 = vmatpush1.msra.mxu0 0.0
    %747 = vmatprep.subr.mxu0 0.0
    %748 = vmatpush1.msra.mxu0 0.0
    %749 = vmatprep.subr.mxu0 0.0
    %750 = vmatpush1.msra.mxu0 0.0
    %751 = vmatprep.subr.mxu0 0.0
    %752 = vmatpush1.msra.mxu0 0.0
    %753 = vmatprep.subr.mxu0 0.0
    %754 = vmatpush1.msra.mxu0 0.0
    %755 = vmatprep.subr.mxu0 0.0
    %756 = vmatpush1.msra.mxu0 0.0
    %757 = vmatprep.subr.mxu0 0.0
    %v758 = vand.u32 %v640, 4294901760
    %v759 = vsub.f32 %v640, %v758
    %v760 = vand.u32 %v759, 4294901760
    %v761 = vsub.f32 %v759, %v760
    %v762 = vand.u32 %v761, 4294901760
    %763 = vmatpush1.msra.mxu0 %v762
    %764 = vmatprep.subr.mxu0 0.0
    %v765 = vand.u32 %v639, 4294901760
    %v766 = vsub.f32 %v639, %v765
    %v767 = vand.u32 %v766, 4294901760
    %v768 = vsub.f32 %v766, %v767
    %v769 = vand.u32 %v768, 4294901760
    %770 = vmatpush1.msra.mxu0 %v769
    %771 = vmatprep.subr.mxu0 0.0
    %772 = vmatpush2.msra.mxu0 0.0
    %773 = vmatprep.subr.mxu0 0.0
    %774 = vmatpush2.msra.mxu0 0.0
    %775 = vmatprep.subr.mxu0 0.0
    %776 = vmatpush2.msra.mxu0 0.0
    %777 = vmatprep.subr.mxu0 0.0
    %778 = vmatpush2.msra.mxu0 0.0
    %779 = vmatprep.subr.mxu0 0.0
    %780 = vmatpush2.msra.mxu0 0.0
    %781 = vmatprep.subr.mxu0 0.0
    %782 = vmatpush2.msra.mxu0 0.0
    %783 = vmatprep.subr.mxu0 0.0
    %784 = vmatpush2.msra.mxu0 0.0
    %785 = vmatprep.subr.mxu0 0.0
    %786 = vmatpush2.msra.mxu0 0.0
    %787 = vmatprep.subr.mxu0 0.0
    %788 = vmatpush2.msra.mxu0 0.0
    %789 = vmatprep.subr.mxu0 0.0
    %790 = vmatpush2.msra.mxu0 0.0
    %791 = vmatprep.subr.mxu0 0.0
    %792 = vmatpush2.msra.mxu0 0.0
    %793 = vmatprep.subr.mxu0 0.0
    %794 = vmatpush2.msra.mxu0 0.0
    %795 = vmatprep.subr.mxu0 0.0
    %796 = vmatpush2.msra.mxu0 0.0
    %797 = vmatprep.subr.mxu0 0.0
    %798 = vmatpush2.msra.mxu0 0.0
    %799 = vmatprep.subr.mxu0 0.0
    %800 = vmatpush2.msra.mxu0 0.0
    %801 = vmatprep.subr.mxu0 0.0
    %802 = vmatpush2.msra.mxu0 0.0
    %803 = vmatprep.mubr.f32.mxu0 0.0
    %v804 = vand.u32 %v650, 4294901760
    %805 = vmatmul.mubr.f32.gmra.mxu0 %v804
    %v806 = vpop.f32.mrf.mxu0
    %v807 = vadd.f32 %v726, %v806
    %v808 = vpop.f32.mrf.mxu0
    %809 = vdwg.mxu0
    %810 = vmatprep.subr.mxu0 0.0
    %811 = vmatpush1.msra.mxu0 0.0
    %812 = vmatprep.subr.mxu0 0.0
    %813 = vmatpush1.msra.mxu0 0.0
    %814 = vmatprep.subr.mxu0 0.0
    %815 = vmatpush1.msra.mxu0 0.0
    %816 = vmatprep.subr.mxu0 0.0
    %817 = vmatpush1.msra.mxu0 0.0
    %818 = vmatprep.subr.mxu0 0.0
    %819 = vmatpush1.msra.mxu0 0.0
    %820 = vmatprep.subr.mxu0 0.0
    %821 = vmatpush1.msra.mxu0 0.0
    %822 = vmatprep.subr.mxu0 0.0
    %823 = vmatpush1.msra.mxu0 0.0
    %824 = vmatprep.subr.mxu0 0.0
    %825 = vmatpush1.msra.mxu0 0.0
    %826 = vmatprep.subr.mxu0 0.0
    %827 = vmatpush1.msra.mxu0 0.0
    %828 = vmatprep.subr.mxu0 0.0
    %829 = vmatpush1.msra.mxu0 0.0
    %830 = vmatprep.subr.mxu0 0.0
    %831 = vmatpush1.msra.mxu0 0.0
    %832 = vmatprep.subr.mxu0 0.0
    %833 = vmatpush1.msra.mxu0 0.0
    %834 = vmatprep.subr.mxu0 0.0
    %835 = vmatpush1.msra.mxu0 0.0
    %836 = vmatprep.subr.mxu0 0.0
    %837 = vmatpush1.msra.mxu0 0.0
    %838 = vmatprep.subr.mxu0 0.0
    %v839 = vand.u32 %v640, 4294901760
    %v840 = vsub.f32 %v640, %v839
    %841 = vmatpush1.msra.mxu0 %v840
    %842 = vmatprep.subr.mxu0 0.0
    %v843 = vand.u32 %v639, 4294901760
    %v844 = vsub.f32 %v639, %v843
    %845 = vmatpush1.msra.mxu0 %v844
    %846 = vmatprep.subr.mxu0 0.0
    %847 = vmatpush2.msra.mxu0 0.0
    %848 = vmatprep.subr.mxu0 0.0
    %849 = vmatpush2.msra.mxu0 0.0
    %850 = vmatprep.subr.mxu0 0.0
    %851 = vmatpush2.msra.mxu0 0.0
    %852 = vmatprep.subr.mxu0 0.0
    %853 = vmatpush2.msra.mxu0 0.0
    %854 = vmatprep.subr.mxu0 0.0
    %855 = vmatpush2.msra.mxu0 0.0
    %856 = vmatprep.subr.mxu0 0.0
    %857 = vmatpush2.msra.mxu0 0.0
    %858 = vmatprep.subr.mxu0 0.0
    %859 = vmatpush2.msra.mxu0 0.0
    %860 = vmatprep.subr.mxu0 0.0
    %861 = vmatpush2.msra.mxu0 0.0
    %862 = vmatprep.subr.mxu0 0.0
    %863 = vmatpush2.msra.mxu0 0.0
    %864 = vmatprep.subr.mxu0 0.0
    %865 = vmatpush2.msra.mxu0 0.0
    %866 = vmatprep.subr.mxu0 0.0
    %867 = vmatpush2.msra.mxu0 0.0
    %868 = vmatprep.subr.mxu0 0.0
    %869 = vmatpush2.msra.mxu0 0.0
    %870 = vmatprep.subr.mxu0 0.0
    %871 = vmatpush2.msra.mxu0 0.0
    %872 = vmatprep.subr.mxu0 0.0
    %873 = vmatpush2.msra.mxu0 0.0
    %874 = vmatprep.subr.mxu0 0.0
    %875 = vmatpush2.msra.mxu0 0.0
    %876 = vmatprep.subr.mxu0 0.0
    %877 = vmatpush2.msra.mxu0 0.0
    %878 = vmatprep.mubr.f32.mxu0 0.0
    %v879 = vand.u32 %v650, 4294901760
    %v880 = vsub.f32 %v650, %v879
    %881 = vmatmul.mubr.f32.gmra.mxu0 %v880
    %v882 = vpop.f32.mrf.mxu0
    %v883 = vadd.f32 %v807, %v882
    %v884 = vpop.f32.mrf.mxu0
    %885 = vdwg.mxu0
    %886 = vmatprep.subr.mxu0 0.0
    %887 = vmatpush1.msra.mxu0 0.0
    %888 = vmatprep.subr.mxu0 0.0
    %889 = vmatpush1.msra.mxu0 0.0
    %890 = vmatprep.subr.mxu0 0.0
    %891 = vmatpush1.msra.mxu0 0.0
    %892 = vmatprep.subr.mxu0 0.0
    %893 = vmatpush1.msra.mxu0 0.0
    %894 = vmatprep.subr.mxu0 0.0
    %895 = vmatpush1.msra.mxu0 0.0
    %896 = vmatprep.subr.mxu0 0.0
    %897 = vmatpush1.msra.mxu0 0.0
    %898 = vmatprep.subr.mxu0 0.0
    %899 = vmatpush1.msra.mxu0 0.0
    %900 = vmatprep.subr.mxu0 0.0
    %901 = vmatpush1.msra.mxu0 0.0
    %902 = vmatprep.subr.mxu0 0.0
    %903 = vmatpush1.msra.mxu0 0.0
    %904 = vmatprep.subr.mxu0 0.0
    %905 = vmatpush1.msra.mxu0 0.0
    %906 = vmatprep.subr.mxu0 0.0
    %907 = vmatpush1.msra.mxu0 0.0
    %908 = vmatprep.subr.mxu0 0.0
    %909 = vmatpush1.msra.mxu0 0.0
    %910 = vmatprep.subr.mxu0 0.0
    %911 = vmatpush1.msra.mxu0 0.0
    %912 = vmatprep.subr.mxu0 0.0
    %913 = vmatpush1.msra.mxu0 0.0
    %914 = vmatprep.subr.mxu0 0.0
    %v915 = vand.u32 %v640, 4294901760
    %916 = vmatpush1.msra.mxu0 %v915
    %917 = vmatprep.subr.mxu0 0.0
    %v918 = vand.u32 %v639, 4294901760
    %919 = vmatpush1.msra.mxu0 %v918
    %920 = vmatprep.subr.mxu0 0.0
    %921 = vmatpush2.msra.mxu0 0.0
    %922 = vmatprep.subr.mxu0 0.0
    %923 = vmatpush2.msra.mxu0 0.0
    %924 = vmatprep.subr.mxu0 0.0
    %925 = vmatpush2.msra.mxu0 0.0
    %926 = vmatprep.subr.mxu0 0.0
    %927 = vmatpush2.msra.mxu0 0.0
    %928 = vmatprep.subr.mxu0 0.0
    %929 = vmatpush2.msra.mxu0 0.0
    %930 = vmatprep.subr.mxu0 0.0
    %931 = vmatpush2.msra.mxu0 0.0
    %932 = vmatprep.subr.mxu0 0.0
    %933 = vmatpush2.msra.mxu0 0.0
    %934 = vmatprep.subr.mxu0 0.0
    %935 = vmatpush2.msra.mxu0 0.0
    %936 = vmatprep.subr.mxu0 0.0
    %937 = vmatpush2.msra.mxu0 0.0
    %938 = vmatprep.subr.mxu0 0.0
    %939 = vmatpush2.msra.mxu0 0.0
    %940 = vmatprep.subr.mxu0 0.0
    %941 = vmatpush2.msra.mxu0 0.0
    %942 = vmatprep.subr.mxu0 0.0
    %943 = vmatpush2.msra.mxu0 0.0
    %944 = vmatprep.subr.mxu0 0.0
    %945 = vmatpush2.msra.mxu0 0.0
    %946 = vmatprep.subr.mxu0 0.0
    %947 = vmatpush2.msra.mxu0 0.0
    %948 = vmatprep.subr.mxu0 0.0
    %949 = vmatpush2.msra.mxu0 0.0
    %950 = vmatprep.subr.mxu0 0.0
    %951 = vmatpush2.msra.mxu0 0.0
    %952 = vmatprep.mubr.f32.mxu0 0.0
    %v953 = vand.u32 %v650, 4294901760
    %v954 = vsub.f32 %v650, %v953
    %v955 = vand.u32 %v954, 4294901760
    %956 = vmatmul.mubr.f32.gmra.mxu0 %v955
    %v957 = vpop.f32.mrf.mxu0
    %v958 = vadd.f32 %v883, %v957
    %v959 = vpop.f32.mrf.mxu0
    %960 = vdwg.mxu0
    %961 = vmatprep.subr.mxu0 0.0
    %962 = vmatpush1.msra.mxu0 0.0
    %963 = vmatprep.subr.mxu0 0.0
    %964 = vmatpush1.msra.mxu0 0.0
    %965 = vmatprep.subr.mxu0 0.0
    %966 = vmatpush1.msra.mxu0 0.0
    %967 = vmatprep.subr.mxu0 0.0
    %968 = vmatpush1.msra.mxu0 0.0
    %969 = vmatprep.subr.mxu0 0.0
    %970 = vmatpush1.msra.mxu0 0.0
    %971 = vmatprep.subr.mxu0 0.0
    %972 = vmatpush1.msra.mxu0 0.0
    %973 = vmatprep.subr.mxu0 0.0
    %974 = vmatpush1.msra.mxu0 0.0
    %975 = vmatprep.subr.mxu0 0.0
    %976 = vmatpush1.msra.mxu0 0.0
    %977 = vmatprep.subr.mxu0 0.0
    %978 = vmatpush1.msra.mxu0 0.0
    %979 = vmatprep.subr.mxu0 0.0
    %980 = vmatpush1.msra.mxu0 0.0
    %981 = vmatprep.subr.mxu0 0.0
    %982 = vmatpush1.msra.mxu0 0.0
    %983 = vmatprep.subr.mxu0 0.0
    %984 = vmatpush1.msra.mxu0 0.0
    %985 = vmatprep.subr.mxu0 0.0
    %986 = vmatpush1.msra.mxu0 0.0
    %987 = vmatprep.subr.mxu0 0.0
    %988 = vmatpush1.msra.mxu0 0.0
    %989 = vmatprep.subr.mxu0 0.0
    %v990 = vand.u32 %v640, 4294901760
    %v991 = vsub.f32 %v640, %v990
    %v992 = vand.u32 %v991, 4294901760
    %993 = vmatpush1.msra.mxu0 %v992
    %994 = vmatprep.subr.mxu0 0.0
    %v995 = vand.u32 %v639, 4294901760
    %v996 = vsub.f32 %v639, %v995
    %v997 = vand.u32 %v996, 4294901760
    %998 = vmatpush1.msra.mxu0 %v997
    %999 = vmatprep.subr.mxu0 0.0
    %1000 = vmatpush2.msra.mxu0 0.0
    %1001 = vmatprep.subr.mxu0 0.0
    %1002 = vmatpush2.msra.mxu0 0.0
    %1003 = vmatprep.subr.mxu0 0.0
    %1004 = vmatpush2.msra.mxu0 0.0
    %1005 = vmatprep.subr.mxu0 0.0
    %1006 = vmatpush2.msra.mxu0 0.0
    %1007 = vmatprep.subr.mxu0 0.0
    %1008 = vmatpush2.msra.mxu0 0.0
    %1009 = vmatprep.subr.mxu0 0.0
    %1010 = vmatpush2.msra.mxu0 0.0
    %1011 = vmatprep.subr.mxu0 0.0
    %1012 = vmatpush2.msra.mxu0 0.0
    %1013 = vmatprep.subr.mxu0 0.0
    %1014 = vmatpush2.msra.mxu0 0.0
    %1015 = vmatprep.subr.mxu0 0.0
    %1016 = vmatpush2.msra.mxu0 0.0
    %1017 = vmatprep.subr.mxu0 0.0
    %1018 = vmatpush2.msra.mxu0 0.0
    %1019 = vmatprep.subr.mxu0 0.0
    %1020 = vmatpush2.msra.mxu0 0.0
    %1021 = vmatprep.subr.mxu0 0.0
    %1022 = vmatpush2.msra.mxu0 0.0
    %1023 = vmatprep.subr.mxu0 0.0
    %1024 = vmatpush2.msra.mxu0 0.0
    %1025 = vmatprep.subr.mxu0 0.0
    %1026 = vmatpush2.msra.mxu0 0.0
    %1027 = vmatprep.subr.mxu0 0.0
    %1028 = vmatpush2.msra.mxu0 0.0
    %1029 = vmatprep.subr.mxu0 0.0
    %1030 = vmatpush2.msra.mxu0 0.0
    %1031 = vmatprep.mubr.f32.mxu0 0.0
    %v1032 = vand.u32 %v650, 4294901760
    %1033 = vmatmul.mubr.f32.gmra.mxu0 %v1032
    %v1034 = vpop.f32.mrf.mxu0
    %v1035 = vadd.f32 %v958, %v1034
    %v1036 = vpop.f32.mrf.mxu0
    %1037 = vdwg.mxu0
    %1038 = vmatprep.subr.mxu0 0.0
    %1039 = vmatpush1.msra.mxu0 0.0
    %1040 = vmatprep.subr.mxu0 0.0
    %1041 = vmatpush1.msra.mxu0 0.0
    %1042 = vmatprep.subr.mxu0 0.0
    %1043 = vmatpush1.msra.mxu0 0.0
    %1044 = vmatprep.subr.mxu0 0.0
    %1045 = vmatpush1.msra.mxu0 0.0
    %1046 = vmatprep.subr.mxu0 0.0
    %1047 = vmatpush1.msra.mxu0 0.0
    %1048 = vmatprep.subr.mxu0 0.0
    %1049 = vmatpush1.msra.mxu0 0.0
    %1050 = vmatprep.subr.mxu0 0.0
    %1051 = vmatpush1.msra.mxu0 0.0
    %1052 = vmatprep.subr.mxu0 0.0
    %1053 = vmatpush1.msra.mxu0 0.0
    %1054 = vmatprep.subr.mxu0 0.0
    %1055 = vmatpush1.msra.mxu0 0.0
    %1056 = vmatprep.subr.mxu0 0.0
    %1057 = vmatpush1.msra.mxu0 0.0
    %1058 = vmatprep.subr.mxu0 0.0
    %1059 = vmatpush1.msra.mxu0 0.0
    %1060 = vmatprep.subr.mxu0 0.0
    %1061 = vmatpush1.msra.mxu0 0.0
    %1062 = vmatprep.subr.mxu0 0.0
    %1063 = vmatpush1.msra.mxu0 0.0
    %1064 = vmatprep.subr.mxu0 0.0
    %1065 = vmatpush1.msra.mxu0 0.0
    %1066 = vmatprep.subr.mxu0 0.0
    %v1067 = vand.u32 %v640, 4294901760
    %1068 = vmatpush1.msra.mxu0 %v1067
    %1069 = vmatprep.subr.mxu0 0.0
    %v1070 = vand.u32 %v639, 4294901760
    %1071 = vmatpush1.msra.mxu0 %v1070
    %1072 = vmatprep.subr.mxu0 0.0
    %1073 = vmatpush2.msra.mxu0 0.0
    %1074 = vmatprep.subr.mxu0 0.0
    %1075 = vmatpush2.msra.mxu0 0.0
    %1076 = vmatprep.subr.mxu0 0.0
    %1077 = vmatpush2.msra.mxu0 0.0
    %1078 = vmatprep.subr.mxu0 0.0
    %1079 = vmatpush2.msra.mxu0 0.0
    %1080 = vmatprep.subr.mxu0 0.0
    %1081 = vmatpush2.msra.mxu0 0.0
    %1082 = vmatprep.subr.mxu0 0.0
    %1083 = vmatpush2.msra.mxu0 0.0
    %1084 = vmatprep.subr.mxu0 0.0
    %1085 = vmatpush2.msra.mxu0 0.0
    %1086 = vmatprep.subr.mxu0 0.0
    %1087 = vmatpush2.msra.mxu0 0.0
    %1088 = vmatprep.subr.mxu0 0.0
    %1089 = vmatpush2.msra.mxu0 0.0
    %1090 = vmatprep.subr.mxu0 0.0
    %1091 = vmatpush2.msra.mxu0 0.0
    %1092 = vmatprep.subr.mxu0 0.0
    %1093 = vmatpush2.msra.mxu0 0.0
    %1094 = vmatprep.subr.mxu0 0.0
    %1095 = vmatpush2.msra.mxu0 0.0
    %1096 = vmatprep.subr.mxu0 0.0
    %1097 = vmatpush2.msra.mxu0 0.0
    %1098 = vmatprep.subr.mxu0 0.0
    %1099 = vmatpush2.msra.mxu0 0.0
    %1100 = vmatprep.subr.mxu0 0.0
    %1101 = vmatpush2.msra.mxu0 0.0
    %1102 = vmatprep.subr.mxu0 0.0
    %1103 = vmatpush2.msra.mxu0 0.0
    %1104 = vmatprep.mubr.f32.mxu0 0.0
    %v1105 = vand.u32 %v650, 4294901760
    %1106 = vmatmul.mubr.f32.gmra.mxu0 %v1105
    %v1107 = vpop.f32.mrf.mxu0
    %v1108 = vadd.f32 %v1035, %v1107
    %v1109 = vpop.f32.mrf.mxu0
    %1110 = vdwg.mxu0
    %v1111 = vsub.f32 0.0, %v1108
    %v1112 = vmul.f32 %v1111, 1.442695
    %v1113 = vpow.pop %v1112
    %v1114 = vadd.f32 %v1113, 1.0
    %v1115 = vrcp.pop %v1114
    %v1116 = vmul.f32 1.0, %v1115
    %v1117 = vlaneseq
    %v1118 = vshrl.u32 %v1117, 7
    %v1119 = vsub.s32 0, %v1118
    %v1120 = vrot.slane %v1116, %v1119
    %1122 = vbcast.lane.b32.xlu0 %v1120, 256
    %v1123 = vpop.permute.xlu0 %1122
    %s1125 = sor.u32 256, 8
    %1126 = vbcast.lane.b32.xlu0 %v1120, %s1125
    %v1127 = vpop.permute.xlu0 %1126
    %s1129 = sor.u32 256, 16
    %1130 = vbcast.lane.b32.xlu0 %v1120, %s1129
    %v1131 = vpop.permute.xlu0 %1130
    %s1133 = sor.u32 256, 24
    %1134 = vbcast.lane.b32.xlu0 %v1120, %s1133
    %v1135 = vpop.permute.xlu0 %1134
    %v1136 = vlaneseq
    %v1137 = vshrl.u32 %v1136, 7
    %v1138 = vsub.s32 1, %v1137
    %v1139 = vrot.slane %v1116, %v1138
    %1141 = vbcast.lane.b32.xlu0 %v1139, 256
    %v1142 = vpop.permute.xlu0 %1141
    %s1144 = sor.u32 256, 8
    %1145 = vbcast.lane.b32.xlu0 %v1139, %s1144
    %v1146 = vpop.permute.xlu0 %1145
    %s1148 = sor.u32 256, 16
    %1149 = vbcast.lane.b32.xlu0 %v1139, %s1148
    %v1150 = vpop.permute.xlu0 %1149
    %s1152 = sor.u32 256, 24
    %1153 = vbcast.lane.b32.xlu0 %v1139, %s1152
    %v1154 = vpop.permute.xlu0 %1153
    %v1155 = vmul.f32 %v35, %v1123
    %v1156 = vmul.f32 %v36, %v1123
    %v1157 = vmul.f32 %v37, %v1127
    %v1158 = vmul.f32 %v38, %v1127
    %v1159 = vmul.f32 %v39, %v1131
    %v1160 = vmul.f32 %v40, %v1131
    %v1161 = vmul.f32 %v41, %v1135
    %v1162 = vmul.f32 %v42, %v1135
    %v1163 = vmul.f32 %v43, %v1142
    %v1164 = vmul.f32 %v44, %v1142
    %v1165 = vmul.f32 %v45, %v1146
    %v1166 = vmul.f32 %v46, %v1146
    %v1167 = vmul.f32 %v47, %v1150
    %v1168 = vmul.f32 %v48, %v1150
    %v1169 = vmul.f32 %v49, %v1154
    %v1170 = vmul.f32 %v50, %v1154
    %1171 = vst [vmem:[#allocation5] sm:$0xff] %v1155
    %1172 = vst [vmem:[#allocation5 + $0x8] sm:$0xff] %v1156
    %1173 = vst [vmem:[#allocation5 + $0x10] sm:$0xff] %v1157
    %1174 = vst [vmem:[#allocation5 + $0x18] sm:$0xff] %v1158
    %1175 = vst [vmem:[#allocation5 + $0x20] sm:$0xff] %v1159
    %1176 = vst [vmem:[#allocation5 + $0x28] sm:$0xff] %v1160
    %1177 = vst [vmem:[#allocation5 + $0x30] sm:$0xff] %v1161
    %1178 = vst [vmem:[#allocation5 + $0x38] sm:$0xff] %v1162
    %1179 = vst [vmem:[#allocation5 + $0x40] sm:$0xff] %v1163
    %1180 = vst [vmem:[#allocation5 + $0x48] sm:$0xff] %v1164
    %1181 = vst [vmem:[#allocation5 + $0x50] sm:$0xff] %v1165
    %1182 = vst [vmem:[#allocation5 + $0x58] sm:$0xff] %v1166
    %1183 = vst [vmem:[#allocation5 + $0x60] sm:$0xff] %v1167
    %1184 = vst [vmem:[#allocation5 + $0x68] sm:$0xff] %v1168
    %1185 = vst [vmem:[#allocation5 + $0x70] sm:$0xff] %v1169
    %1186 = vst [vmem:[#allocation5 + $0x78] sm:$0xff] %v1170
    // Predicated region
    $region26: #{tpu_custom_call.1} parent=1 // pred_check
      _
    $region27: #{tpu_custom_call.1} parent=1 // pred_check_branch
      %1188 = sbr.rel (0) target = $region29
    $region28: #{tpu_custom_call.1} parent=1 // pred_region
      %s1190 = ssub.s32 2048, 2048
      %1191 = vsyncadd [#allocation4], %s1190
      %s1192 = sshll.u32 [#allocation5], 4
      %s1193 = int_to_ptr.vmem [resolvable:$true] %s1192
      %1198 = dma.vmem_to_hbm [thread:$0]  %s1193, 2048, %s5, [#allocation4], 256, 256, 16
    $region29: #{tpu_custom_call.1} parent=1 // pred_fallthru
      _
    // Predicated region
    $region30: #{tpu_custom_call.1} parent=1 // pred_check
      _
    $region31: #{tpu_custom_call.1} parent=1 // pred_check_branch
      %1200 = sbr.rel (0) target = $region33
    $region32: #{tpu_custom_call.1} parent=1 // pred_region
      %1201 = dma.done [#allocation4], 2048
    $region33: #{tpu_custom_call.1} parent=1 // pred_fallthru
      _
    %1202 = vsyncpa [#allocation3], 1
    %1203 = vsyncpa [#allocation4], 1

</llo_original>
